<compile_context>
chip_gen: v5e
topology: v5e:2x2
jax: 0.10.0
libtpu: 0.0.40
codegen_flags: <defaults>
</compile_context>

<pallas_src>
import jax
import jax.numpy as jnp
from jax.experimental import pallas as pl
from jax.experimental.pallas import tpu as pltpu


def _round_up(x, m):
    return (x + m - 1) // m * m


# ---------------------------------------------------------------------------
# Kernel 1: fusion head (one shot, whole arrays resident in VMEM, no grid)
#   h_bert  = relu(xb @ Wbp + bbp)
#   h_srgnn = relu(xs @ Wsp + bsp)
#   h1      = relu(cat(h_bert, h_srgnn) @ W1 + b1)   # W1 split: W1a | W1b
#   h       = h1 @ W2 + b2
# ---------------------------------------------------------------------------
def head_kernel(xb_ref, xs_ref,
                wbp_ref, bbp_ref,
                wsp_ref, bsp_ref,
                w1a_ref, w1b_ref, b1_ref,
                w2_ref, b2_ref,
                h_ref):
    h_bert = jnp.maximum(
        jnp.dot(xb_ref[...], wbp_ref[...],
                preferred_element_type=jnp.float32) + bbp_ref[...], 0.0)
    h_srgnn = jnp.maximum(
        jnp.dot(xs_ref[...], wsp_ref[...],
                preferred_element_type=jnp.float32) + bsp_ref[...], 0.0)
    # cat((h_bert, h_srgnn), -1) @ W1  ==  h_bert @ W1a + h_srgnn @ W1b
    h1 = jnp.maximum(
        jnp.dot(h_bert, w1a_ref[...], preferred_element_type=jnp.float32)
        + jnp.dot(h_srgnn, w1b_ref[...], preferred_element_type=jnp.float32)
        + b1_ref[...], 0.0)
    h_ref[...] = (jnp.dot(h1, w2_ref[...], preferred_element_type=jnp.float32)
                  + b2_ref[...])


# ---------------------------------------------------------------------------
# Kernel 2: vocab-streaming logits.  Grid: (V_pad // vt,), vocab axis parallel.
#   logits[:, tile] = h @ E_T[:, tile]        (E_T pre-transposed: [H, V_pad])
# ---------------------------------------------------------------------------
def logits_kernel(h_ref, et_ref, out_ref):
    out_ref[...] = jnp.dot(h_ref[...], et_ref[...],
                           preferred_element_type=jnp.float32)


def prepare_embedding(E, *, vocab_tile=2048, stream_dtype=jnp.bfloat16):
    """One-time (per checkpoint, OUTSIDE the per-step path): transpose the
    [V, H] token-embedding table to [H, V_pad], cast to the streaming dtype
    (bf16 halves the dominant HBM read on all generations; accumulation stays
    f32 in the kernel), and zero-pad the vocab axis so every grid tile is full.
    Returns (E_T, vocab_tile_used)."""
    V, H = E.shape
    vt = _round_up(max(128, min(vocab_tile, _round_up(V, 128))), 128)
    v_pad = _round_up(V, vt)
    # Megacore friendliness (v7x has 2 TCs): keep at least two grid steps.
    if v_pad // vt < 2 and vt >= 256:
        vt //= 2
        v_pad = _round_up(V, vt)
    E_T = jnp.swapaxes(E, 0, 1).astype(stream_dtype)
    if v_pad != V:
        E_T = jnp.pad(E_T, ((0, 0), (0, v_pad - V)))
    return E_T, vt


def hybrid_forward(xb, xs, params, e_t, vocab_tile, vocab):
    """xb, xs: [B, H] f32 encoder outputs (bert4rec / srgnn).
    e_t: [H, V_pad] pre-transposed / pre-padded embedding from
    prepare_embedding (bf16).  Returns logits [B, vocab] f32."""
    B, H = xb.shape
    h_dim, v_pad = e_t.shape
    assert h_dim == H
    assert v_pad % vocab_tile == 0

    # --- phase 1: fusion head (tiny, runs once, weights never pipelined) ---
    # TODO(synk): for large serving batches, tile this call over B (e.g. 128
    #             rows per grid step) instead of whole-array VMEM residency.
    h = pl.pallas_call(
        head_kernel,
        out_shape=jax.ShapeDtypeStruct((B, H), jnp.float32),
    )(xb, xs,
      params["Wbp"], params["bbp"],
      params["Wsp"], params["bsp"],
      params["W1a"], params["W1b"], params["b1"],
      params["W2"], params["b2"])

    # Match the streamed E dtype so the MXU runs a native bf16 matmul; h is
    # tiny and stays resident, so the cast is negligible.
    h_s = h.astype(e_t.dtype)

    vt = vocab_tile
    grid = (v_pad // vt,)
    et_itemsize = jnp.dtype(e_t.dtype).itemsize

    # VMEM budget derived from the actual footprint (double-buffered E tile +
    # double-buffered output tile + resident h), with headroom, capped below
    # v7x's 64 MiB physical VMEM.
    vmem_need = 2 * H * vt * et_itemsize + 2 * B * vt * 4 + B * H * et_itemsize
    vmem_limit = int(min(max(2 * vmem_need, 16 << 20), 48 << 20))

    cost = pl.CostEstimate(
        flops=2 * B * H * v_pad,
        transcendentals=0,
        bytes_accessed=(H * v_pad * et_itemsize   # E stream (dominant)
                        + B * v_pad * 4           # logits writeback
                        + B * H * et_itemsize))   # resident h

    logits = pl.pallas_call(
        logits_kernel,
        out_shape=jax.ShapeDtypeStruct((B, v_pad), jnp.float32),
        grid_spec=pltpu.PrefetchScalarGridSpec(
            num_scalar_prefetch=0,
            grid=grid,
            in_specs=[
                pl.BlockSpec((B, H), lambda j: (0, 0)),    # h (resident)
                pl.BlockSpec((H, vt), lambda j: (0, j)),   # E_T tile, lane-dense
            ],
            out_specs=pl.BlockSpec((B, vt), lambda j: (0, j)),
        ),
        compiler_params=pltpu.CompilerParams(
            # No cross-tile dependency -> vocab axis shards across TensorCores.
            dimension_semantics=("parallel",),
            vmem_limit_bytes=vmem_limit),
        cost_estimate=cost,
    )(h_s, e_t)

    # Drop zero-padded vocab columns, if any.
    if v_pad != vocab:
        logits = logits[:, :vocab]
    return logits


def hybrid_reference(xb, xs, params):
    relu = lambda z: jnp.maximum(z, 0.0)
    h_bert = relu(xb @ params["Wbp"] + params["bbp"])
    h_srgnn = relu(xs @ params["Wsp"] + params["bsp"])
    h = jnp.concatenate([h_bert, h_srgnn], axis=-1)
    W1 = jnp.concatenate([params["W1a"], params["W1b"]], axis=0)
    h = relu(h @ W1 + params["b1"])
    h = h @ params["W2"] + params["b2"]
    return h @ params["E"].T


def init_params(key, hidden, vocab):
    ks = jax.random.split(key, 8)
    s = 1.0 / jnp.sqrt(hidden)
    return {
        "Wbp": jax.random.normal(ks[0], (hidden, hidden), jnp.float32) * s,
        "bbp": jax.random.normal(ks[1], (1, hidden), jnp.float32) * 0.01,
        "Wsp": jax.random.normal(ks[2], (hidden, hidden), jnp.float32) * s,
        "bsp": jax.random.normal(ks[3], (1, hidden), jnp.float32) * 0.01,
        "W1a": jax.random.normal(ks[4], (hidden, hidden), jnp.float32) * s,
        "W1b": jax.random.normal(ks[5], (hidden, hidden), jnp.float32) * s,
        "b1": jnp.zeros((1, hidden), jnp.float32),
        "W2": jax.random.normal(ks[6], (hidden, hidden), jnp.float32) * s,
        "b2": jnp.zeros((1, hidden), jnp.float32),
        "E": jax.random.normal(ks[7], (vocab, hidden), jnp.float32) * s,
    }


if __name__ == "__main__":
    # Small demo sizes.  VOCAB=1000 is deliberately NOT a multiple of the tile
    # to exercise the pad-and-slice path used for real vocab sizes.
    # TODO(synk): production should pad HIDDEN to a multiple of 128 (and keep
    #             batch >= 16 for bf16 sublane packing) before the kernels.
    B, HIDDEN, VOCAB = 8, 32, 1000
    key = jax.random.PRNGKey(0)
    kx, kp = jax.random.split(key)
    kxb, kxs = jax.random.split(kx)

    # stand-ins for bert4rec(seq, alibi) and srgnn(graph) outputs
    xb = jax.random.normal(kxb, (B, HIDDEN), jnp.float32)
    xs = jax.random.normal(kxs, (B, HIDDEN), jnp.float32)
    params = init_params(kp, HIDDEN, VOCAB)

    # One-time embedding preparation (transpose + bf16 cast + vocab pad),
    # hoisted out of the per-call path so the forward never re-reads/re-writes
    # the full [V, H] table.
    e_t, vt = prepare_embedding(params["E"], vocab_tile=2048)
    e_t = jax.block_until_ready(e_t)

    logits = hybrid_forward(xb, xs, params, e_t, vt, VOCAB)
    logits = jax.block_until_ready(logits)

    ref = hybrid_reference(xb, xs, params)
    assert logits.shape == (B, VOCAB)
    # bf16 E/h streaming (f32 accumulation) -> looser-than-f32 tolerance.
    assert jnp.allclose(logits, ref, atol=3e-2, rtol=3e-2), (
        float(jnp.max(jnp.abs(logits - ref))))
    print("KERNEL_OK")
</pallas_src>

<mosaic_0001>
module attributes {stable_mosaic.version = 11 : i64} {
  func.func @head_kernel(%arg0: memref<8x32xf32, #tpu.memory_space<vmem>>, %arg1: memref<8x32xf32, #tpu.memory_space<vmem>>, %arg2: memref<32x32xf32, #tpu.memory_space<vmem>>, %arg3: memref<1x32xf32, #tpu.memory_space<vmem>>, %arg4: memref<32x32xf32, #tpu.memory_space<vmem>>, %arg5: memref<1x32xf32, #tpu.memory_space<vmem>>, %arg6: memref<32x32xf32, #tpu.memory_space<vmem>>, %arg7: memref<32x32xf32, #tpu.memory_space<vmem>>, %arg8: memref<1x32xf32, #tpu.memory_space<vmem>>, %arg9: memref<32x32xf32, #tpu.memory_space<vmem>>, %arg10: memref<1x32xf32, #tpu.memory_space<vmem>>, %arg11: memref<8x32xf32, #tpu.memory_space<vmem>>) attributes {dimension_semantics = [], scalar_prefetch = 0 : i64, scratch_operands = 0 : i64, tpu.core_type = #tpu.core_type<tc>} {
    %c0 = arith.constant 0 : index
    %c0_0 = arith.constant 0 : index
    %0 = vector.load %arg0[%c0, %c0_0] : memref<8x32xf32, #tpu.memory_space<vmem>>, vector<8x32xf32>
    %c0_1 = arith.constant 0 : index
    %c0_2 = arith.constant 0 : index
    %1 = vector.load %arg2[%c0_1, %c0_2] : memref<32x32xf32, #tpu.memory_space<vmem>>, vector<32x32xf32>
    %cst = arith.constant dense<0.000000e+00> : vector<8x32xf32>
    %2 = tpu.matmul %0, %1, %cst {dimension_numbers = #tpu.dot_dimension_numbers<[1], [0], [0], [1], [0, 0, 1, 1], [], []>} : vector<8x32xf32>, vector<32x32xf32>, vector<8x32xf32> -> vector<8x32xf32>
    %c0_3 = arith.constant 0 : index
    %c0_4 = arith.constant 0 : index
    %3 = vector.load %arg3[%c0_3, %c0_4] : memref<1x32xf32, #tpu.memory_space<vmem>>, vector<1x32xf32>
    %4 = vector.broadcast %3 : vector<1x32xf32> to vector<8x32xf32>
    %5 = arith.addf %2, %4 : vector<8x32xf32>
    %cst_5 = arith.constant 0.000000e+00 : f32
    %6 = vector.broadcast %cst_5 : f32 to vector<8x32xf32>
    %7 = arith.maximumf %5, %6 : vector<8x32xf32>
    %c0_6 = arith.constant 0 : index
    %c0_7 = arith.constant 0 : index
    %8 = vector.load %arg1[%c0_6, %c0_7] : memref<8x32xf32, #tpu.memory_space<vmem>>, vector<8x32xf32>
    %c0_8 = arith.constant 0 : index
    %c0_9 = arith.constant 0 : index
    %9 = vector.load %arg4[%c0_8, %c0_9] : memref<32x32xf32, #tpu.memory_space<vmem>>, vector<32x32xf32>
    %cst_10 = arith.constant dense<0.000000e+00> : vector<8x32xf32>
    %10 = tpu.matmul %8, %9, %cst_10 {dimension_numbers = #tpu.dot_dimension_numbers<[1], [0], [0], [1], [0, 0, 1, 1], [], []>} : vector<8x32xf32>, vector<32x32xf32>, vector<8x32xf32> -> vector<8x32xf32>
    %c0_11 = arith.constant 0 : index
    %c0_12 = arith.constant 0 : index
    %11 = vector.load %arg5[%c0_11, %c0_12] : memref<1x32xf32, #tpu.memory_space<vmem>>, vector<1x32xf32>
    %12 = vector.broadcast %11 : vector<1x32xf32> to vector<8x32xf32>
    %13 = arith.addf %10, %12 : vector<8x32xf32>
    %cst_13 = arith.constant 0.000000e+00 : f32
    %14 = vector.broadcast %cst_13 : f32 to vector<8x32xf32>
    %15 = arith.maximumf %13, %14 : vector<8x32xf32>
    %c0_14 = arith.constant 0 : index
    %c0_15 = arith.constant 0 : index
    %16 = vector.load %arg6[%c0_14, %c0_15] : memref<32x32xf32, #tpu.memory_space<vmem>>, vector<32x32xf32>
    %cst_16 = arith.constant dense<0.000000e+00> : vector<8x32xf32>
    %17 = tpu.matmul %7, %16, %cst_16 {dimension_numbers = #tpu.dot_dimension_numbers<[1], [0], [0], [1], [0, 0, 1, 1], [], []>} : vector<8x32xf32>, vector<32x32xf32>, vector<8x32xf32> -> vector<8x32xf32>
    %c0_17 = arith.constant 0 : index
    %c0_18 = arith.constant 0 : index
    %18 = vector.load %arg7[%c0_17, %c0_18] : memref<32x32xf32, #tpu.memory_space<vmem>>, vector<32x32xf32>
    %cst_19 = arith.constant dense<0.000000e+00> : vector<8x32xf32>
    %19 = tpu.matmul %15, %18, %cst_19 {dimension_numbers = #tpu.dot_dimension_numbers<[1], [0], [0], [1], [0, 0, 1, 1], [], []>} : vector<8x32xf32>, vector<32x32xf32>, vector<8x32xf32> -> vector<8x32xf32>
    %20 = arith.addf %17, %19 : vector<8x32xf32>
    %c0_20 = arith.constant 0 : index
    %c0_21 = arith.constant 0 : index
    %21 = vector.load %arg8[%c0_20, %c0_21] : memref<1x32xf32, #tpu.memory_space<vmem>>, vector<1x32xf32>
    %22 = vector.broadcast %21 : vector<1x32xf32> to vector<8x32xf32>
    %23 = arith.addf %20, %22 : vector<8x32xf32>
    %cst_22 = arith.constant 0.000000e+00 : f32
    %24 = vector.broadcast %cst_22 : f32 to vector<8x32xf32>
    %25 = arith.maximumf %23, %24 : vector<8x32xf32>
    %c0_23 = arith.constant 0 : index
    %c0_24 = arith.constant 0 : index
    %26 = vector.load %arg9[%c0_23, %c0_24] : memref<32x32xf32, #tpu.memory_space<vmem>>, vector<32x32xf32>
    %cst_25 = arith.constant dense<0.000000e+00> : vector<8x32xf32>
    %27 = tpu.matmul %25, %26, %cst_25 {dimension_numbers = #tpu.dot_dimension_numbers<[1], [0], [0], [1], [0, 0, 1, 1], [], []>} : vector<8x32xf32>, vector<32x32xf32>, vector<8x32xf32> -> vector<8x32xf32>
    %c0_26 = arith.constant 0 : index
    %c0_27 = arith.constant 0 : index
    %28 = vector.load %arg10[%c0_26, %c0_27] : memref<1x32xf32, #tpu.memory_space<vmem>>, vector<1x32xf32>
    %29 = vector.broadcast %28 : vector<1x32xf32> to vector<8x32xf32>
    %30 = arith.addf %27, %29 : vector<8x32xf32>
    %c0_28 = arith.constant 0 : index
    %c0_29 = arith.constant 0 : index
    %31 = vector.load %arg11[%c0_28, %c0_29] : memref<8x32xf32, #tpu.memory_space<vmem>>, vector<8x32xf32>
    tpu.vector_store %arg11[%c0_28, %c0_29], %30 {strides = array<i32>} : memref<8x32xf32, #tpu.memory_space<vmem>>, vector<8x32xf32>,
    return
  }
}

</mosaic_0001>

<llo_original>
// kernel: tpu_custom_call.1
$region0: #{tpu_custom_call.1}
  #allocation0 [shape = 'u32[]', space=smem, size = 0x4, offset = 0x4, fixed_abs, tag = 'smem constant byte address 0x4 - core index']
  #allocation1 [shape = 'u32[72,128]{1,0:T(1,128)}', space=vmem, size = 0x9000, scoped, tag = 'internal scratch']
  %s0 = inlined_call_operand.hbm [shape: f32[8,32], index: 0, kind: input, shape index: {}]
  %s1 = inlined_call_operand.hbm [shape: f32[8,32], index: 1, kind: input, shape index: {}]
  %s2 = inlined_call_operand.hbm [shape: f32[32,32], index: 2, kind: input, shape index: {}]
  %s3 = inlined_call_operand.vmem [shape: f32[1,32], index: 3, kind: input, shape index: {}]
  %s4 = inlined_call_operand.hbm [shape: f32[32,32], index: 4, kind: input, shape index: {}]
  %s5 = inlined_call_operand.vmem [shape: f32[1,32], index: 5, kind: input, shape index: {}]
  %s6 = inlined_call_operand.hbm [shape: f32[32,32], index: 6, kind: input, shape index: {}]
  %s7 = inlined_call_operand.hbm [shape: f32[32,32], index: 7, kind: input, shape index: {}]
  %s8 = inlined_call_operand.vmem [shape: f32[1,32], index: 8, kind: input, shape index: {}]
  %s9 = inlined_call_operand.hbm [shape: f32[32,32], index: 9, kind: input, shape index: {}]
  %s10 = inlined_call_operand.vmem [shape: f32[1,32], index: 10, kind: input, shape index: {}]
  %s11 = inlined_call_operand.hbm [shape: f32[8,32], index: 11, kind: output, shape index: {}]
  %s12 = sld [smem:[#allocation0]]
  $region82: #{tpu_custom_call.1} parent=0
    _
  %s14 = ssub.s32 1, %s12
  %s15 = scalar_select 0, %s14, %s12
  $region1: #{tpu_custom_call.1} parent=0
    #allocation2 [shape = 'u8[4096]{0}', space=vmem, size = 0x1000, scoped, tag = 'input window, operand 0, single buffered']
    #allocation3 [shape = 's32[1]{0}', space=sflag, size = 0x4, scoped, tag = 'scoped memory for tpu_custom_call.1']
    #allocation4 [shape = 's32[1]{0}', space=sflag, size = 0x4, scoped, tag = 'scoped memory for tpu_custom_call.1']
    #allocation5 [shape = 'u8[4096]{0}', space=vmem, size = 0x1000, scoped, tag = 'input window, operand 1, single buffered']
    #allocation6 [shape = 's32[1]{0}', space=sflag, size = 0x4, scoped, tag = 'scoped memory for tpu_custom_call.1']
    #allocation7 [shape = 'u8[16384]{0}', space=vmem, size = 0x4000, scoped, tag = 'input window, operand 2, single buffered']
    #allocation8 [shape = 'u8[16384]{0}', space=vmem, size = 0x4000, scoped, tag = 'input window, operand 4, single buffered']
    #allocation9 [shape = 's32[1]{0}', space=sflag, size = 0x4, scoped, tag = 'scoped memory for tpu_custom_call.1']
    #allocation10 [shape = 'u8[16384]{0}', space=vmem, size = 0x4000, scoped, tag = 'input window, operand 6, single buffered']
    #allocation11 [shape = 'u8[16384]{0}', space=vmem, size = 0x4000, scoped, tag = 'input window, operand 7, single buffered']
    #allocation12 [shape = 's32[1]{0}', space=sflag, size = 0x4, scoped, tag = 'scoped memory for tpu_custom_call.1']
    #allocation13 [shape = 'u8[16384]{0}', space=vmem, size = 0x4000, scoped, tag = 'input window, operand 9, single buffered']
    #allocation14 [shape = 'u8[4096]{0}', space=vmem, size = 0x1000, scoped, tag = 'output window, operand 0, single buffered']
    %16 = vsyncpa [#allocation3], 0
    %17 = vsyncpa [#allocation6], 0
    %18 = vsyncpa [#allocation9], 0
    %19 = vsyncpa [#allocation12], 0
    %20 = vsyncpa [#allocation4], 0
    // Predicated region
    $region2: #{tpu_custom_call.1} parent=1 // pred_check
      _
    $region3: #{tpu_custom_call.1} parent=1 // pred_check_branch
      %22 = sbr.rel (0) target = $region5
    $region4: #{tpu_custom_call.1} parent=1 // pred_region
      %24 = vsyncadd [#allocation3], 0
      %s26 = sshll.u32 %s0, 4
      %s27 = int_to_ptr.hbm [resolvable:$true] %s26
      %s28 = sshll.u32 [#allocation2], 4
      %s29 = int_to_ptr.vmem [resolvable:$true] %s28
      %31 = dma.hbm_to_vmem [thread:$0]  %s27, 128, %s29, [#allocation3]
    $region5: #{tpu_custom_call.1} parent=1 // pred_fallthru
      _
    // Predicated region
    $region6: #{tpu_custom_call.1} parent=1 // pred_check
      _
    $region7: #{tpu_custom_call.1} parent=1 // pred_check_branch
      %33 = sbr.rel (0) target = $region9
    $region8: #{tpu_custom_call.1} parent=1 // pred_region
      %35 = vsyncadd [#allocation6], 0
      %s37 = sshll.u32 %s1, 4
      %s38 = int_to_ptr.hbm [resolvable:$true] %s37
      %s39 = sshll.u32 [#allocation5], 4
      %s40 = int_to_ptr.vmem [resolvable:$true] %s39
      %42 = dma.hbm_to_vmem [thread:$0]  %s38, 128, %s40, [#allocation6]
    $region9: #{tpu_custom_call.1} parent=1 // pred_fallthru
      _
    // Predicated region
    $region10: #{tpu_custom_call.1} parent=1 // pred_check
      _
    $region11: #{tpu_custom_call.1} parent=1 // pred_check_branch
      %44 = sbr.rel (0) target = $region13
    $region12: #{tpu_custom_call.1} parent=1 // pred_region
      %46 = vsyncadd [#allocation6], 0
      %s47 = sshll.u32 %s2, 4
      %s48 = int_to_ptr.hbm [resolvable:$true] %s47
      %s49 = sshll.u32 [#allocation7], 4
      %s50 = int_to_ptr.vmem [resolvable:$true] %s49
      %55 = dma.hbm_to_vmem [thread:$0]  %s48, 512, %s50, [#allocation6], 128, 128, 8
    $region13: #{tpu_custom_call.1} parent=1 // pred_fallthru
      _
    // Predicated region
    $region14: #{tpu_custom_call.1} parent=1 // pred_check
      _
    $region15: #{tpu_custom_call.1} parent=1 // pred_check_branch
      %57 = sbr.rel (0) target = $region17
    $region16: #{tpu_custom_call.1} parent=1 // pred_region
      _
    $region17: #{tpu_custom_call.1} parent=1 // pred_fallthru
      _
    // Predicated region
    $region18: #{tpu_custom_call.1} parent=1 // pred_check
      _
    $region19: #{tpu_custom_call.1} parent=1 // pred_check_branch
      %59 = sbr.rel (0) target = $region21
    $region20: #{tpu_custom_call.1} parent=1 // pred_region
      %61 = vsyncadd [#allocation9], 0
      %s62 = sshll.u32 %s4, 4
      %s63 = int_to_ptr.hbm [resolvable:$true] %s62
      %s64 = sshll.u32 [#allocation8], 4
      %s65 = int_to_ptr.vmem [resolvable:$true] %s64
      %70 = dma.hbm_to_vmem [thread:$0]  %s63, 512, %s65, [#allocation9], 128, 128, 8
    $region21: #{tpu_custom_call.1} parent=1 // pred_fallthru
      _
    // Predicated region
    $region22: #{tpu_custom_call.1} parent=1 // pred_check
      _
    $region23: #{tpu_custom_call.1} parent=1 // pred_check_branch
      %72 = sbr.rel (0) target = $region25
    $region24: #{tpu_custom_call.1} parent=1 // pred_region
      _
    $region25: #{tpu_custom_call.1} parent=1 // pred_fallthru
      _
    // Predicated region
    $region26: #{tpu_custom_call.1} parent=1 // pred_check
      _
    $region27: #{tpu_custom_call.1} parent=1 // pred_check_branch
      %74 = sbr.rel (0) target = $region29
    $region28: #{tpu_custom_call.1} parent=1 // pred_region
      %76 = vsyncadd [#allocation9], 0
      %s77 = sshll.u32 %s6, 4
      %s78 = int_to_ptr.hbm [resolvable:$true] %s77
      %s79 = sshll.u32 [#allocation10], 4
      %s80 = int_to_ptr.vmem [resolvable:$true] %s79
      %85 = dma.hbm_to_vmem [thread:$0]  %s78, 512, %s80, [#allocation9], 128, 128, 8
    $region29: #{tpu_custom_call.1} parent=1 // pred_fallthru
      _
    // Predicated region
    $region30: #{tpu_custom_call.1} parent=1 // pred_check
      _
    $region31: #{tpu_custom_call.1} parent=1 // pred_check_branch
      %87 = sbr.rel (0) target = $region33
    $region32: #{tpu_custom_call.1} parent=1 // pred_region
      %89 = vsyncadd [#allocation12], 0
      %s90 = sshll.u32 %s7, 4
      %s91 = int_to_ptr.hbm [resolvable:$true] %s90
      %s92 = sshll.u32 [#allocation11], 4
      %s93 = int_to_ptr.vmem [resolvable:$true] %s92
      %98 = dma.hbm_to_vmem [thread:$0]  %s91, 512, %s93, [#allocation12], 128, 128, 8
    $region33: #{tpu_custom_call.1} parent=1 // pred_fallthru
      _
    // Predicated region
    $region34: #{tpu_custom_call.1} parent=1 // pred_check
      _
    $region35: #{tpu_custom_call.1} parent=1 // pred_check_branch
      %100 = sbr.rel (0) target = $region37
    $region36: #{tpu_custom_call.1} parent=1 // pred_region
      _
    $region37: #{tpu_custom_call.1} parent=1 // pred_fallthru
      _
    // Predicated region
    $region38: #{tpu_custom_call.1} parent=1 // pred_check
      _
    $region39: #{tpu_custom_call.1} parent=1 // pred_check_branch
      %102 = sbr.rel (0) target = $region41
    $region40: #{tpu_custom_call.1} parent=1 // pred_region
      %104 = vsyncadd [#allocation12], 0
      %s105 = sshll.u32 %s9, 4
      %s106 = int_to_ptr.hbm [resolvable:$true] %s105
      %s107 = sshll.u32 [#allocation13], 4
      %s108 = int_to_ptr.vmem [resolvable:$true] %s107
      %113 = dma.hbm_to_vmem [thread:$0]  %s106, 512, %s108, [#allocation12], 128, 128, 8
    $region41: #{tpu_custom_call.1} parent=1 // pred_fallthru
      _
    // Predicated region
    $region42: #{tpu_custom_call.1} parent=1 // pred_check
      _
    $region43: #{tpu_custom_call.1} parent=1 // pred_check_branch
      %115 = sbr.rel (0) target = $region45
    $region44: #{tpu_custom_call.1} parent=1 // pred_region
      _
    $region45: #{tpu_custom_call.1} parent=1 // pred_fallthru
      _
    // Predicated region
    $region46: #{tpu_custom_call.1} parent=1 // pred_check
      _
    $region47: #{tpu_custom_call.1} parent=1 // pred_check_branch
      %117 = sbr.rel (0) target = $region49
    $region48: #{tpu_custom_call.1} parent=1 // pred_region
      %119 = dma.done [#allocation3], 128
    $region49: #{tpu_custom_call.1} parent=1 // pred_fallthru
      _
    // Predicated region
    $region50: #{tpu_custom_call.1} parent=1 // pred_check
      _
    $region51: #{tpu_custom_call.1} parent=1 // pred_check_branch
      %121 = sbr.rel (0) target = $region53
    $region52: #{tpu_custom_call.1} parent=1 // pred_region
      %123 = dma.done [#allocation6], 128
    $region53: #{tpu_custom_call.1} parent=1 // pred_fallthru
      _
    // Predicated region
    $region54: #{tpu_custom_call.1} parent=1 // pred_check
      _
    $region55: #{tpu_custom_call.1} parent=1 // pred_check_branch
      %125 = sbr.rel (0) target = $region57
    $region56: #{tpu_custom_call.1} parent=1 // pred_region
      %127 = dma.done [#allocation6], 512
    $region57: #{tpu_custom_call.1} parent=1 // pred_fallthru
      _
    // Predicated region
    $region58: #{tpu_custom_call.1} parent=1 // pred_check
      _
    $region59: #{tpu_custom_call.1} parent=1 // pred_check_branch
      %129 = sbr.rel (0) target = $region61
    $region60: #{tpu_custom_call.1} parent=1 // pred_region
      %131 = dma.done [#allocation9], 512
    $region61: #{tpu_custom_call.1} parent=1 // pred_fallthru
      _
    // Predicated region
    $region62: #{tpu_custom_call.1} parent=1 // pred_check
      _
    $region63: #{tpu_custom_call.1} parent=1 // pred_check_branch
      %133 = sbr.rel (0) target = $region65
    $region64: #{tpu_custom_call.1} parent=1 // pred_region
      %135 = dma.done [#allocation9], 512
    $region65: #{tpu_custom_call.1} parent=1 // pred_fallthru
      _
    // Predicated region
    $region66: #{tpu_custom_call.1} parent=1 // pred_check
      _
    $region67: #{tpu_custom_call.1} parent=1 // pred_check_branch
      %137 = sbr.rel (0) target = $region69
    $region68: #{tpu_custom_call.1} parent=1 // pred_region
      %139 = dma.done [#allocation12], 512
    $region69: #{tpu_custom_call.1} parent=1 // pred_fallthru
      _
    // Predicated region
    $region70: #{tpu_custom_call.1} parent=1 // pred_check
      _
    $region71: #{tpu_custom_call.1} parent=1 // pred_check_branch
      %141 = sbr.rel (0) target = $region73
    $region72: #{tpu_custom_call.1} parent=1 // pred_region
      %143 = dma.done [#allocation12], 512
    $region73: #{tpu_custom_call.1} parent=1 // pred_fallthru
      _
    %v144 = vld [vmem:[#allocation2] sm:$0xff]
    %v145 = vld [vmem:[#allocation7] sm:$0xff]
    %v146 = vld [vmem:[#allocation7 + $0x8] sm:$0xff]
    %v147 = vld [vmem:[#allocation7 + $0x10] sm:$0xff]
    %v148 = vld [vmem:[#allocation7 + $0x18] sm:$0xff]
    %v149 = vld [vmem:[%s3] sm:$0x1]
    %v151 = vperm.slane %v149, 0
    %vm153 = vcmask 261120
    %v155 = vsel %vm153, %v144, 0
    %157 = vmatpush.msra.mxu0 0.0
    %158 = vmatpush.msra.mxu0 0.0
    %159 = vmatpush.msra.mxu0 0.0
    %160 = vmatpush.msra.mxu0 0.0
    %161 = vmatpush.msra.mxu0 0.0
    %162 = vmatpush.msra.mxu0 0.0
    %163 = vmatpush.msra.mxu0 0.0
    %164 = vmatpush.msra.mxu0 0.0
    %165 = vmatpush.msra.mxu0 0.0
    %166 = vmatpush.msra.mxu0 0.0
    %167 = vmatpush.msra.mxu0 0.0
    %168 = vmatpush.msra.mxu0 0.0
    %169 = vmatpush.msra.mxu0 %v148
    %170 = vmatpush.msra.mxu0 %v147
    %171 = vmatpush.msra.mxu0 %v146
    %172 = vmatpush.msra.mxu0 %v145
    %173 = vmatmul.f32.gmra.mxu0 %v155
    %v174 = vpop.f32.mrf.mxu0
    %v175 = vadd.f32 %v151, %v174
    %176 = vdwg.mxu0
    %v177 = vmax.f32 %v175, 0.0
    %v178 = vld [vmem:[#allocation5] sm:$0xff]
    %v179 = vld [vmem:[#allocation8] sm:$0xff]
    %v180 = vld [vmem:[#allocation8 + $0x8] sm:$0xff]
    %v181 = vld [vmem:[#allocation8 + $0x10] sm:$0xff]
    %v182 = vld [vmem:[#allocation8 + $0x18] sm:$0xff]
    %v183 = vld [vmem:[%s5] sm:$0x1]
    %v185 = vperm.slane %v183, 0
    %v188 = vsel %vm153, %v178, 0
    %190 = vmatpush.msra.mxu0 0.0
    %191 = vmatpush.msra.mxu0 0.0
    %192 = vmatpush.msra.mxu0 0.0
    %193 = vmatpush.msra.mxu0 0.0
    %194 = vmatpush.msra.mxu0 0.0
    %195 = vmatpush.msra.mxu0 0.0
    %196 = vmatpush.msra.mxu0 0.0
    %197 = vmatpush.msra.mxu0 0.0
    %198 = vmatpush.msra.mxu0 0.0
    %199 = vmatpush.msra.mxu0 0.0
    %200 = vmatpush.msra.mxu0 0.0
    %201 = vmatpush.msra.mxu0 0.0
    %202 = vmatpush.msra.mxu0 %v182
    %203 = vmatpush.msra.mxu0 %v181
    %204 = vmatpush.msra.mxu0 %v180
    %205 = vmatpush.msra.mxu0 %v179
    %206 = vmatmul.f32.gmra.mxu0 %v188
    %v207 = vpop.f32.mrf.mxu0
    %v208 = vadd.f32 %v185, %v207
    %209 = vdwg.mxu0
    %v210 = vmax.f32 %v208, 0.0
    %v211 = vld [vmem:[#allocation10] sm:$0xff]
    %v212 = vld [vmem:[#allocation10 + $0x8] sm:$0xff]
    %v213 = vld [vmem:[#allocation10 + $0x10] sm:$0xff]
    %v214 = vld [vmem:[#allocation10 + $0x18] sm:$0xff]
    %v215 = vld [vmem:[#allocation11] sm:$0xff]
    %v216 = vld [vmem:[#allocation11 + $0x8] sm:$0xff]
    %v217 = vld [vmem:[#allocation11 + $0x10] sm:$0xff]
    %v218 = vld [vmem:[#allocation11 + $0x18] sm:$0xff]
    %v220 = vsel %vm153, %v210, 0
    %222 = vmatpush.msra.mxu0 0.0
    %223 = vmatpush.msra.mxu0 0.0
    %224 = vmatpush.msra.mxu0 0.0
    %225 = vmatpush.msra.mxu0 0.0
    %226 = vmatpush.msra.mxu0 0.0
    %227 = vmatpush.msra.mxu0 0.0
    %228 = vmatpush.msra.mxu0 0.0
    %229 = vmatpush.msra.mxu0 0.0
    %230 = vmatpush.msra.mxu0 0.0
    %231 = vmatpush.msra.mxu0 0.0
    %232 = vmatpush.msra.mxu0 0.0
    %233 = vmatpush.msra.mxu0 0.0
    %234 = vmatpush.msra.mxu0 %v218
    %235 = vmatpush.msra.mxu0 %v217
    %236 = vmatpush.msra.mxu0 %v216
    %237 = vmatpush.msra.mxu0 %v215
    %238 = vmatmul.f32.gmra.mxu0 %v220
    %v239 = vpop.f32.mrf.mxu0
    %v240 = vadd.f32 0.0, %v239
    %241 = vdwg.mxu0
    %v243 = vsel %vm153, %v177, 0
    %245 = vmatpush.msra.mxu0 0.0
    %246 = vmatpush.msra.mxu0 0.0
    %247 = vmatpush.msra.mxu0 0.0
    %248 = vmatpush.msra.mxu0 0.0
    %249 = vmatpush.msra.mxu0 0.0
    %250 = vmatpush.msra.mxu0 0.0
    %251 = vmatpush.msra.mxu0 0.0
    %252 = vmatpush.msra.mxu0 0.0
    %253 = vmatpush.msra.mxu0 0.0
    %254 = vmatpush.msra.mxu0 0.0
    %255 = vmatpush.msra.mxu0 0.0
    %256 = vmatpush.msra.mxu0 0.0
    %257 = vmatpush.msra.mxu0 %v214
    %258 = vmatpush.msra.mxu0 %v213
    %259 = vmatpush.msra.mxu0 %v212
    %260 = vmatpush.msra.mxu0 %v211
    %261 = vmatmul.f32.gmra.mxu0 %v243
    %v262 = vpop.f32.mrf.mxu0
    %v263 = vadd.f32 %v240, %v262
    %264 = vdwg.mxu0
    %v265 = vld [vmem:[%s8] sm:$0x1]
    %v267 = vperm.slane %v265, 0
    %v269 = vadd.f32 %v263, %v267
    %v270 = vmax.f32 %v269, 0.0
    %v271 = vld [vmem:[#allocation13] sm:$0xff]
    %v272 = vld [vmem:[#allocation13 + $0x8] sm:$0xff]
    %v273 = vld [vmem:[#allocation13 + $0x10] sm:$0xff]
    %v274 = vld [vmem:[#allocation13 + $0x18] sm:$0xff]
    %v275 = vld [vmem:[%s10] sm:$0x1]
    %v277 = vperm.slane %v275, 0
    %v280 = vsel %vm153, %v270, 0
    %282 = vmatpush.msra.mxu0 0.0
    %283 = vmatpush.msra.mxu0 0.0
    %284 = vmatpush.msra.mxu0 0.0
    %285 = vmatpush.msra.mxu0 0.0
    %286 = vmatpush.msra.mxu0 0.0
    %287 = vmatpush.msra.mxu0 0.0
    %288 = vmatpush.msra.mxu0 0.0
    %289 = vmatpush.msra.mxu0 0.0
    %290 = vmatpush.msra.mxu0 0.0
    %291 = vmatpush.msra.mxu0 0.0
    %292 = vmatpush.msra.mxu0 0.0
    %293 = vmatpush.msra.mxu0 0.0
    %294 = vmatpush.msra.mxu0 %v274
    %295 = vmatpush.msra.mxu0 %v273
    %296 = vmatpush.msra.mxu0 %v272
    %297 = vmatpush.msra.mxu0 %v271
    %298 = vmatmul.f32.gmra.mxu0 %v280
    %v299 = vpop.f32.mrf.mxu0
    %v300 = vadd.f32 %v277, %v299
    %301 = vdwg.mxu0
    %302 = vst.msk [vmem:[#allocation14] sm:$0xff] %vm153, %v300
    // Predicated region
    $region74: #{tpu_custom_call.1} parent=1 // pred_check
      _
    $region75: #{tpu_custom_call.1} parent=1 // pred_check_branch
      %304 = sbr.rel (0) target = $region77
    $region76: #{tpu_custom_call.1} parent=1 // pred_region
      %306 = vsyncadd [#allocation4], 0
      %s308 = sshll.u32 [#allocation14], 4
      %s309 = int_to_ptr.vmem [resolvable:$true] %s308
      %s310 = sshll.u32 %s11, 4
      %s311 = int_to_ptr.hbm [resolvable:$true] %s310
      %313 = dma.vmem_to_hbm [thread:$0]  %s309, 128, %s311, [#allocation4]
    $region77: #{tpu_custom_call.1} parent=1 // pred_fallthru
      _
    // Predicated region
    $region78: #{tpu_custom_call.1} parent=1 // pred_check
      _
    $region79: #{tpu_custom_call.1} parent=1 // pred_check_branch
      %315 = sbr.rel (0) target = $region81
    $region80: #{tpu_custom_call.1} parent=1 // pred_region
      %317 = dma.done [#allocation4], 128
    $region81: #{tpu_custom_call.1} parent=1 // pred_fallthru
      _
    %318 = vsyncpa [#allocation3], 1
    %319 = vsyncpa [#allocation6], 1
    %320 = vsyncpa [#allocation9], 1
    %321 = vsyncpa [#allocation12], 1
    %322 = vsyncpa [#allocation4], 1

</llo_original>
